<compile_context>
chip_gen: v6e
topology: v6e:2x2x1
jax: 0.10.0
libtpu: 0.0.40
codegen_flags: <defaults>
</compile_context>

<pallas_src>
import jax
import jax.numpy as jnp
from jax.experimental import pallas as pl
from jax.experimental.pallas import tpu as pltpu


_VMEM_LIMIT = 64 * 1024 * 1024   # budgeted for v7x; tiles stay far under it


# ------------------------------ Pallas kernels --------------------------------

def _conv_stats_kernel(wT_ref, patches_ref, out_ref, sum_ref, sq_ref):
    """Pass A: one MXU contraction per M-tile + per-channel batch-stat accumulation.

    wT:      (Cout, K)  bf16  (resident, constant over the grid)
    patches: (K, TM)    bf16  (pipelined over the M grid axis)
    out:     (Cout, TM) f32   conv result, lane-dense (TM multiple of 128)
    sum/sq:  (Cout, 1)  f32   accumulators (same block every grid step)
    """
    acc = jnp.dot(wT_ref[...], patches_ref[...],
                  preferred_element_type=jnp.float32)
    out_ref[...] = acc

    @pl.when(pl.program_id(0) == 0)
    def _():
        sum_ref[...] = jnp.zeros_like(sum_ref)
        sq_ref[...] = jnp.zeros_like(sq_ref)

    sum_ref[...] += jnp.sum(acc, axis=-1, keepdims=True)
    sq_ref[...] += jnp.sum(acc * acc, axis=-1, keepdims=True)


def _bn_relu_kernel(conv_ref, scale_ref, shift_ref, out_ref):
    y = conv_ref[...] * scale_ref[...] + shift_ref[...]
    out_ref[...] = jnp.maximum(y, 0.0)


def _bn_proj_res_relu_kernel(conv_ref, scale_ref, shift_ref, wpT_ref, id_ref,
                             out_ref):
    # BN affine, then the fused 1x1-stride-2 projection of the identity
    # (shape_checking) added as the residual, then ReLU.
    y = conv_ref[...] * scale_ref[...] + shift_ref[...]
    y = y + jnp.dot(wpT_ref[...], id_ref[...], preferred_element_type=jnp.float32)
    out_ref[...] = jnp.maximum(y, 0.0)


def _bn_add_res_relu_kernel(conv_ref, scale_ref, shift_ref, res_ref, out_ref):
    y = conv_ref[...] * scale_ref[...] + shift_ref[...] + res_ref[...]
    out_ref[...] = jnp.maximum(y, 0.0)


# ------------------------------ JAX glue ---------------------------------------

def _pick_tile(M, max_tile=512):
    """Choose an M-tile (multiple of 128) and the padded M extent it divides."""
    if M <= max_tile:
        mp = ((M + 127) // 128) * 128
        return mp, mp
    mp = ((M + max_tile - 1) // max_tile) * max_tile
    return max_tile, mp


def _im2col_3x3(x_nchw, stride):
    """im2col in (K, M) layout: K = 9*Cin (tap-major, cin-minor), M = N*Ho*Wo."""
    # TODO(synk): this still materializes a 9x-duplicated patches array in HBM;
    # building the taps in-kernel from one overlapping VMEM tile would cut ~9x of
    # the input HBM traffic for this memory-bound conv.
    N, C, H, W = x_nchw.shape
    xp = jnp.pad(x_nchw, ((0, 0), (0, 0), (1, 1), (1, 1)))
    Ho = (H + 2 - 3) // stride + 1
    Wo = (W + 2 - 3) // stride + 1
    taps = []
    for kh in range(3):
        for kw in range(3):
            v = xp[:, :, kh:kh + (Ho - 1) * stride + 1:stride,
                   kw:kw + (Wo - 1) * stride + 1:stride]
            taps.append(jnp.transpose(v, (1, 0, 2, 3)).reshape(C, N * Ho * Wo))
    return jnp.concatenate(taps, axis=0), (N, Ho, Wo)


def _conv3x3_batch_stats(x_nchw, w_oihw, gamma, beta, stride, eps):
    """Pass A pallas_call + BN scale/shift folding.

    Returns conv output in (Cout, Mp) layout, per-channel scale/shift, geometry.
    """
    Cout = w_oihw.shape[0]
    patches, (N, Ho, Wo) = _im2col_3x3(x_nchw, stride)
    K, M = patches.shape
    TM, Mp = _pick_tile(M)
    patches = jnp.pad(patches, ((0, 0), (0, Mp - M))).astype(jnp.bfloat16)
    wT = jnp.transpose(w_oihw, (0, 2, 3, 1)).reshape(Cout, K).astype(jnp.bfloat16)

    conv_out, ssum, ssq = pl.pallas_call(
        _conv_stats_kernel,
        out_shape=(jax.ShapeDtypeStruct((Cout, Mp), jnp.float32),
                   jax.ShapeDtypeStruct((Cout, 1), jnp.float32),
                   jax.ShapeDtypeStruct((Cout, 1), jnp.float32)),
        grid=(Mp // TM,),
        in_specs=[pl.BlockSpec((Cout, K), lambda i: (0, 0)),
                  pl.BlockSpec((K, TM), lambda i: (0, i))],
        out_specs=(pl.BlockSpec((Cout, TM), lambda i: (0, i)),
                   pl.BlockSpec((Cout, 1), lambda i: (0, 0)),
                   pl.BlockSpec((Cout, 1), lambda i: (0, 0))),
        compiler_params=pltpu.CompilerParams(
            dimension_semantics=("arbitrary",),   # stats accumulate across M tiles
            vmem_limit_bytes=_VMEM_LIMIT),
    )(wT, patches)

    # Zero-padded M columns contribute exactly 0 to both sums, so dividing by the
    # real M reproduces PyTorch training-mode (biased) batch statistics.
    mean = ssum[:, 0] / M
    var = ssq[:, 0] / M - mean * mean
    scale = (gamma * jax.lax.rsqrt(var + eps)).astype(jnp.float32)
    shift = (beta - mean * scale).astype(jnp.float32)
    return conv_out, scale.reshape(Cout, 1), shift.reshape(Cout, 1), (N, Ho, Wo, M, Mp, TM)


def _bn_res_relu(conv_out, scale, shift, TM, Mp, *, wpT=None, id_flat=None, res=None):
    """Pass B pallas_call: BN affine (+ fused identity projection / residual) + ReLU."""
    Cout = conv_out.shape[0]
    inputs = [conv_out, scale, shift]
    in_specs = [pl.BlockSpec((Cout, TM), lambda i: (0, i)),
                pl.BlockSpec((Cout, 1), lambda i: (0, 0)),
                pl.BlockSpec((Cout, 1), lambda i: (0, 0))]
    if id_flat is not None:
        Cid = id_flat.shape[0]
        kernel = _bn_proj_res_relu_kernel
        inputs += [wpT, id_flat]
        in_specs += [pl.BlockSpec((Cout, Cid), lambda i: (0, 0)),
                     pl.BlockSpec((Cid, TM), lambda i: (0, i))]
    elif res is not None:
        kernel = _bn_add_res_relu_kernel
        inputs += [res]
        in_specs += [pl.BlockSpec((Cout, TM), lambda i: (0, i))]
    else:
        kernel = _bn_relu_kernel
    return pl.pallas_call(
        kernel,
        out_shape=jax.ShapeDtypeStruct((Cout, Mp), jnp.float32),
        grid=(Mp // TM,),
        in_specs=in_specs,
        out_specs=pl.BlockSpec((Cout, TM), lambda i: (0, i)),
        compiler_params=pltpu.CompilerParams(
            dimension_semantics=("parallel",),    # independent tiles -> both TCs on v7x
            vmem_limit_bytes=_VMEM_LIMIT),
    )(*inputs)


def resnet_block_forward(x_nchw, identity_nchw, params, eps=1e-5):
    """Mirrors resnet_block(in_c, out_c, num_conv=2, down_block=True).forward."""
    # idx 0 (even): conv(3x3, stride 2) -> BN -> ReLU
    conv1, sc1, sh1, (N, Ho, Wo, M1, Mp1, TM1) = _conv3x3_batch_stats(
        x_nchw, params["w1"], params["g1"], params["b1"], stride=2, eps=eps)
    h_flat = _bn_res_relu(conv1, sc1, sh1, TM1, Mp1)
    Cout = conv1.shape[0]
    h = jnp.transpose(h_flat[:, :M1].reshape(Cout, N, Ho, Wo), (1, 0, 2, 3))

    # idx 1 (odd): conv(3x3, stride 1) -> BN -> (x += identity) -> ReLU; identity = x.
    conv2, sc2, sh2, (N2, Ho2, Wo2, M2, Mp2, TM2) = _conv3x3_batch_stats(
        h, params["w2"], params["g2"], params["b2"], stride=1, eps=eps)

    Cid = identity_nchw.shape[1]
    if Cid != Cout:
        # shape_checking(): 1x1 stride-2 padding-0 projection, fused into pass B.
        # TODO(synk): PyTorch builds a *fresh randomly-initialized* Conv2d here every
        # forward; we use the deterministic weight params["wp"] instead.
        id_sub = identity_nchw[:, :, ::2, ::2]
        id_flat = jnp.transpose(id_sub, (1, 0, 2, 3)).reshape(Cid, M2)
        id_flat = jnp.pad(id_flat, ((0, 0), (0, Mp2 - M2))).astype(jnp.bfloat16)
        wpT = params["wp"].reshape(Cout, Cid).astype(jnp.bfloat16)
        out_flat = _bn_res_relu(conv2, sc2, sh2, TM2, Mp2, wpT=wpT, id_flat=id_flat)
    else:
        res = jnp.transpose(identity_nchw, (1, 0, 2, 3)).reshape(Cout, M2)
        res = jnp.pad(res, ((0, 0), (0, Mp2 - M2))).astype(jnp.float32)
        out_flat = _bn_res_relu(conv2, sc2, sh2, TM2, Mp2, res=res)

    out = jnp.transpose(out_flat[:, :M2].reshape(Cout, N2, Ho2, Wo2), (1, 0, 2, 3))
    return out


# --------------------------- pure-JAX reference --------------------------------

def _ref_forward(x, identity, params, eps=1e-5):
    def conv(x, w, stride, pad):
        return jax.lax.conv_general_dilated(
            x, w, (stride, stride), [(pad, pad), (pad, pad)],
            dimension_numbers=("NCHW", "OIHW", "NCHW"))

    def bn(x, g, b):
        mean = x.mean(axis=(0, 2, 3), keepdims=True)
        var = ((x - mean) ** 2).mean(axis=(0, 2, 3), keepdims=True)
        xn = (x - mean) / jnp.sqrt(var + eps)
        return xn * g.reshape(1, -1, 1, 1) + b.reshape(1, -1, 1, 1)

    h = jax.nn.relu(bn(conv(x, params["w1"], 2, 1), params["g1"], params["b1"]))
    ident = conv(identity, params["wp"], 2, 0)
    h = jax.nn.relu(bn(conv(h, params["w2"], 1, 1), params["g2"], params["b2"]) + ident)
    return h


# ------------------------------------ main -------------------------------------

if __name__ == "__main__":
    key = jax.random.PRNGKey(0)
    kx, k1, kp, k2, kg1, kb1, kg2, kb2 = jax.random.split(key, 8)

    in_channels = out_channels = 8    # resnet_block(8, 8, num_conv=2, down_block=True)
    N, H, W = 2, 16, 16
    # down-block's first conv expects in_channels // 2 input channels
    x = jax.random.normal(kx, (N, in_channels // 2, H, W), jnp.float32)
    identity = x

    params = {
        "w1": 0.1 * jax.random.normal(k1, (out_channels, in_channels // 2, 3, 3), jnp.float32),
        "g1": 1.0 + 0.1 * jax.random.normal(kg1, (out_channels,), jnp.float32),
        "b1": 0.1 * jax.random.normal(kb1, (out_channels,), jnp.float32),
        "wp": 0.1 * jax.random.normal(kp, (out_channels, in_channels // 2, 1, 1), jnp.float32),
        "w2": 0.1 * jax.random.normal(k2, (out_channels, out_channels, 3, 3), jnp.float32),
        "g2": 1.0 + 0.1 * jax.random.normal(kg2, (out_channels,), jnp.float32),
        "b2": 0.1 * jax.random.normal(kb2, (out_channels,), jnp.float32),
    }

    out = jax.jit(resnet_block_forward)(x, identity, params)
    out = jax.block_until_ready(out)

    assert out.shape == (N, out_channels, H // 2, W // 2), out.shape
    ref = _ref_forward(x, identity, params)
    # bf16 MXU inputs (f32 accumulation) -> tolerance relaxed vs pure-f32 reference.
    assert jnp.allclose(out, ref, rtol=3e-2, atol=3e-2), \
        float(jnp.max(jnp.abs(out - ref)))
    print("KERNEL_OK")
</pallas_src>

<mosaic_0001>
module attributes {stable_mosaic.version = 11 : i64} {
  func.func @_bn_relu_kernel(%arg0: i32, %arg1: memref<8x128xf32, #tpu.memory_space<vmem>>, %arg2: memref<8x1xf32, #tpu.memory_space<vmem>>, %arg3: memref<8x1xf32, #tpu.memory_space<vmem>>, %arg4: memref<8x128xf32, #tpu.memory_space<vmem>>) attributes {dimension_semantics = [#tpu.dimension_semantics<parallel>], iteration_bounds = array<i64: 1>, scalar_prefetch = 0 : i64, scratch_operands = 0 : i64, tpu.core_type = #tpu.core_type<tc>, window_params = [{transform_indices = @transform_0, window_bounds = array<i64: 8, 128>}, {pipeline_mode = #tpu.pipeline_mode<synchronous>, transform_indices = @transform_1, window_bounds = array<i64: 8, 1>}, {pipeline_mode = #tpu.pipeline_mode<synchronous>, transform_indices = @transform_2, window_bounds = array<i64: 8, 1>}, {transform_indices = @transform_3, window_bounds = array<i64: 8, 128>}]} {
    %c0 = arith.constant 0 : index
    %c0_0 = arith.constant 0 : index
    %0 = vector.load %arg1[%c0, %c0_0] : memref<8x128xf32, #tpu.memory_space<vmem>>, vector<8x128xf32>
    %c0_1 = arith.constant 0 : index
    %c0_2 = arith.constant 0 : index
    %1 = vector.load %arg2[%c0_1, %c0_2] : memref<8x1xf32, #tpu.memory_space<vmem>>, vector<8x1xf32>
    %2 = vector.broadcast %1 : vector<8x1xf32> to vector<8x128xf32>
    %3 = arith.mulf %0, %2 : vector<8x128xf32>
    %c0_3 = arith.constant 0 : index
    %c0_4 = arith.constant 0 : index
    %4 = vector.load %arg3[%c0_3, %c0_4] : memref<8x1xf32, #tpu.memory_space<vmem>>, vector<8x1xf32>
    %5 = vector.broadcast %4 : vector<8x1xf32> to vector<8x128xf32>
    %6 = arith.addf %3, %5 : vector<8x128xf32>
    %cst = arith.constant 0.000000e+00 : f32
    %7 = vector.broadcast %cst : f32 to vector<8x128xf32>
    %8 = arith.maximumf %6, %7 : vector<8x128xf32>
    %c0_5 = arith.constant 0 : index
    %c0_6 = arith.constant 0 : index
    %9 = vector.load %arg4[%c0_5, %c0_6] : memref<8x128xf32, #tpu.memory_space<vmem>>, vector<8x128xf32>
    tpu.vector_store %arg4[%c0_5, %c0_6], %8 {strides = array<i32>} : memref<8x128xf32, #tpu.memory_space<vmem>>, vector<8x128xf32>,
    return
  }
  func.func @transform_0(%arg0: i32) -> (i32, i32) {
    %c0_i32 = arith.constant 0 : i32
    %c0_i32_0 = arith.constant 0 : i32
    return %c0_i32, %arg0 : i32, i32
  }
  func.func @transform_1(%arg0: i32) -> (i32, i32) {
    %c0_i32 = arith.constant 0 : i32
    %c0_i32_0 = arith.constant 0 : i32
    %c0_i32_1 = arith.constant 0 : i32
    return %c0_i32, %c0_i32_0 : i32, i32
  }
  func.func @transform_2(%arg0: i32) -> (i32, i32) {
    %c0_i32 = arith.constant 0 : i32
    %c0_i32_0 = arith.constant 0 : i32
    %c0_i32_1 = arith.constant 0 : i32
    return %c0_i32, %c0_i32_0 : i32, i32
  }
  func.func @transform_3(%arg0: i32) -> (i32, i32) {
    %c0_i32 = arith.constant 0 : i32
    %c0_i32_0 = arith.constant 0 : i32
    return %c0_i32, %arg0 : i32, i32
  }
}

module attributes {stable_mosaic.version = 11 : i64} {
  func.func @_conv_stats_kernel(%arg0: i32, %arg1: memref<8x36xbf16, #tpu.memory_space<vmem>>, %arg2: memref<36x128xbf16, #tpu.memory_space<vmem>>, %arg3: memref<8x128xf32, #tpu.memory_space<vmem>>, %arg4: memref<8x1xf32, #tpu.memory_space<vmem>>, %arg5: memref<8x1xf32, #tpu.memory_space<vmem>>) attributes {dimension_semantics = [#tpu.dimension_semantics<arbitrary>], iteration_bounds = array<i64: 1>, scalar_prefetch = 0 : i64, scratch_operands = 0 : i64, tpu.core_type = #tpu.core_type<tc>, window_params = [{pipeline_mode = #tpu.pipeline_mode<synchronous>, transform_indices = @transform_0, window_bounds = array<i64: 8, 36>}, {transform_indices = @transform_1, window_bounds = array<i64: 36, 128>}, {transform_indices = @transform_2, window_bounds = array<i64: 8, 128>}, {pipeline_mode = #tpu.pipeline_mode<synchronous>, transform_indices = @transform_3, window_bounds = array<i64: 8, 1>}, {pipeline_mode = #tpu.pipeline_mode<synchronous>, transform_indices = @transform_4, window_bounds = array<i64: 8, 1>}]} {
    %c0 = arith.constant 0 : index
    %c0_0 = arith.constant 0 : index
    %0 = vector.load %arg1[%c0, %c0_0] : memref<8x36xbf16, #tpu.memory_space<vmem>>, vector<8x36xbf16>
    %c0_1 = arith.constant 0 : index
    %c0_2 = arith.constant 0 : index
    %1 = vector.load %arg2[%c0_1, %c0_2] : memref<36x128xbf16, #tpu.memory_space<vmem>>, vector<36x128xbf16>
    %cst = arith.constant dense<0.000000e+00> : vector<8x128xf32>
    %2 = tpu.matmul %0, %1, %cst {dimension_numbers = #tpu.dot_dimension_numbers<[1], [0], [0], [1], [0, 0, 1, 1], [], []>} : vector<8x36xbf16>, vector<36x128xbf16>, vector<8x128xf32> -> vector<8x128xf32>
    %c0_3 = arith.constant 0 : index
    %c0_4 = arith.constant 0 : index
    %3 = vector.load %arg3[%c0_3, %c0_4] : memref<8x128xf32, #tpu.memory_space<vmem>>, vector<8x128xf32>
    tpu.vector_store %arg3[%c0_3, %c0_4], %2 {strides = array<i32>} : memref<8x128xf32, #tpu.memory_space<vmem>>, vector<8x128xf32>,
    %c0_i32 = arith.constant 0 : i32
    %4 = arith.cmpi eq, %arg0, %c0_i32 : i32
    %5 = arith.extui %4 : i1 to i32
    %c0_i32_5 = arith.constant 0 : i32
    %6 = arith.cmpi ne, %5, %c0_i32_5 : i32
    scf.if %6 {
      %cst_16 = arith.constant 0.000000e+00 : f32
      %18 = vector.broadcast %cst_16 : f32 to vector<8x1xf32>
      %c0_17 = arith.constant 0 : index
      %c0_18 = arith.constant 0 : index
      %19 = vector.load %arg4[%c0_17, %c0_18] : memref<8x1xf32, #tpu.memory_space<vmem>>, vector<8x1xf32>
      tpu.vector_store %arg4[%c0_17, %c0_18], %18 {strides = array<i32>} : memref<8x1xf32, #tpu.memory_space<vmem>>, vector<8x1xf32>,
      %cst_19 = arith.constant 0.000000e+00 : f32
      %20 = vector.broadcast %cst_19 : f32 to vector<8x1xf32>
      %c0_20 = arith.constant 0 : index
      %c0_21 = arith.constant 0 : index
      %21 = vector.load %arg5[%c0_20, %c0_21] : memref<8x1xf32, #tpu.memory_space<vmem>>, vector<8x1xf32>
      tpu.vector_store %arg5[%c0_20, %c0_21], %20 {strides = array<i32>} : memref<8x1xf32, #tpu.memory_space<vmem>>, vector<8x1xf32>,
    } else {
    }
    %c0_6 = arith.constant 0 : index
    %c0_7 = arith.constant 0 : index
    %7 = vector.load %arg4[%c0_6, %c0_7] : memref<8x1xf32, #tpu.memory_space<vmem>>, vector<8x1xf32>
    %cst_8 = arith.constant dense<0.000000e+00> : vector<8xf32>
    %8 = vector.multi_reduction <add>, %2, %cst_8 [1] : vector<8x128xf32> to vector<8xf32>
    %9 = vector.shape_cast %8 : vector<8xf32> to vector<8x1xf32>
    %10 = arith.addf %7, %9 : vector<8x1xf32>
    %c0_9 = arith.constant 0 : index
    %c0_10 = arith.constant 0 : index
    %11 = vector.load %arg4[%c0_9, %c0_10] : memref<8x1xf32, #tpu.memory_space<vmem>>, vector<8x1xf32>
    tpu.vector_store %arg4[%c0_9, %c0_10], %10 {strides = array<i32>} : memref<8x1xf32, #tpu.memory_space<vmem>>, vector<8x1xf32>,
    %c0_11 = arith.constant 0 : index
    %c0_12 = arith.constant 0 : index
    %12 = vector.load %arg5[%c0_11, %c0_12] : memref<8x1xf32, #tpu.memory_space<vmem>>, vector<8x1xf32>
    %13 = arith.mulf %2, %2 : vector<8x128xf32>
    %cst_13 = arith.constant dense<0.000000e+00> : vector<8xf32>
    %14 = vector.multi_reduction <add>, %13, %cst_13 [1] : vector<8x128xf32> to vector<8xf32>
    %15 = vector.shape_cast %14 : vector<8xf32> to vector<8x1xf32>
    %16 = arith.addf %12, %15 : vector<8x1xf32>
    %c0_14 = arith.constant 0 : index
    %c0_15 = arith.constant 0 : index
    %17 = vector.load %arg5[%c0_14, %c0_15] : memref<8x1xf32, #tpu.memory_space<vmem>>, vector<8x1xf32>
    tpu.vector_store %arg5[%c0_14, %c0_15], %16 {strides = array<i32>} : memref<8x1xf32, #tpu.memory_space<vmem>>, vector<8x1xf32>,
    return
  }
  func.func @transform_0(%arg0: i32) -> (i32, i32) {
    %c0_i32 = arith.constant 0 : i32
    %c0_i32_0 = arith.constant 0 : i32
    %c0_i32_1 = arith.constant 0 : i32
    return %c0_i32, %c0_i32_0 : i32, i32
  }
  func.func @transform_1(%arg0: i32) -> (i32, i32) {
    %c0_i32 = arith.constant 0 : i32
    %c0_i32_0 = arith.constant 0 : i32
    return %c0_i32, %arg0 : i32, i32
  }
  func.func @transform_2(%arg0: i32) -> (i32, i32) {
    %c0_i32 = arith.constant 0 : i32
    %c0_i32_0 = arith.constant 0 : i32
    return %c0_i32, %arg0 : i32, i32
  }
  func.func @transform_3(%arg0: i32) -> (i32, i32) {
    %c0_i32 = arith.constant 0 : i32
    %c0_i32_0 = arith.constant 0 : i32
    %c0_i32_1 = arith.constant 0 : i32
    return %c0_i32, %c0_i32_0 : i32, i32
  }
  func.func @transform_4(%arg0: i32) -> (i32, i32) {
    %c0_i32 = arith.constant 0 : i32
    %c0_i32_0 = arith.constant 0 : i32
    %c0_i32_1 = arith.constant 0 : i32
    return %c0_i32, %c0_i32_0 : i32, i32
  }
}

module attributes {stable_mosaic.version = 11 : i64} {
  func.func @_conv_stats_kernel(%arg0: i32, %arg1: memref<8x72xbf16, #tpu.memory_space<vmem>>, %arg2: memref<72x128xbf16, #tpu.memory_space<vmem>>, %arg3: memref<8x128xf32, #tpu.memory_space<vmem>>, %arg4: memref<8x1xf32, #tpu.memory_space<vmem>>, %arg5: memref<8x1xf32, #tpu.memory_space<vmem>>) attributes {dimension_semantics = [#tpu.dimension_semantics<arbitrary>], iteration_bounds = array<i64: 1>, scalar_prefetch = 0 : i64, scratch_operands = 0 : i64, tpu.core_type = #tpu.core_type<tc>, window_params = [{pipeline_mode = #tpu.pipeline_mode<synchronous>, transform_indices = @transform_0, window_bounds = array<i64: 8, 72>}, {transform_indices = @transform_1, window_bounds = array<i64: 72, 128>}, {transform_indices = @transform_2, window_bounds = array<i64: 8, 128>}, {pipeline_mode = #tpu.pipeline_mode<synchronous>, transform_indices = @transform_3, window_bounds = array<i64: 8, 1>}, {pipeline_mode = #tpu.pipeline_mode<synchronous>, transform_indices = @transform_4, window_bounds = array<i64: 8, 1>}]} {
    %c0 = arith.constant 0 : index
    %c0_0 = arith.constant 0 : index
    %0 = vector.load %arg1[%c0, %c0_0] : memref<8x72xbf16, #tpu.memory_space<vmem>>, vector<8x72xbf16>
    %c0_1 = arith.constant 0 : index
    %c0_2 = arith.constant 0 : index
    %1 = vector.load %arg2[%c0_1, %c0_2] : memref<72x128xbf16, #tpu.memory_space<vmem>>, vector<72x128xbf16>
    %cst = arith.constant dense<0.000000e+00> : vector<8x128xf32>
    %2 = tpu.matmul %0, %1, %cst {dimension_numbers = #tpu.dot_dimension_numbers<[1], [0], [0], [1], [0, 0, 1, 1], [], []>} : vector<8x72xbf16>, vector<72x128xbf16>, vector<8x128xf32> -> vector<8x128xf32>
    %c0_3 = arith.constant 0 : index
    %c0_4 = arith.constant 0 : index
    %3 = vector.load %arg3[%c0_3, %c0_4] : memref<8x128xf32, #tpu.memory_space<vmem>>, vector<8x128xf32>
    tpu.vector_store %arg3[%c0_3, %c0_4], %2 {strides = array<i32>} : memref<8x128xf32, #tpu.memory_space<vmem>>, vector<8x128xf32>,
    %c0_i32 = arith.constant 0 : i32
    %4 = arith.cmpi eq, %arg0, %c0_i32 : i32
    %5 = arith.extui %4 : i1 to i32
    %c0_i32_5 = arith.constant 0 : i32
    %6 = arith.cmpi ne, %5, %c0_i32_5 : i32
    scf.if %6 {
      %cst_16 = arith.constant 0.000000e+00 : f32
      %18 = vector.broadcast %cst_16 : f32 to vector<8x1xf32>
      %c0_17 = arith.constant 0 : index
      %c0_18 = arith.constant 0 : index
      %19 = vector.load %arg4[%c0_17, %c0_18] : memref<8x1xf32, #tpu.memory_space<vmem>>, vector<8x1xf32>
      tpu.vector_store %arg4[%c0_17, %c0_18], %18 {strides = array<i32>} : memref<8x1xf32, #tpu.memory_space<vmem>>, vector<8x1xf32>,
      %cst_19 = arith.constant 0.000000e+00 : f32
      %20 = vector.broadcast %cst_19 : f32 to vector<8x1xf32>
      %c0_20 = arith.constant 0 : index
      %c0_21 = arith.constant 0 : index
      %21 = vector.load %arg5[%c0_20, %c0_21] : memref<8x1xf32, #tpu.memory_space<vmem>>, vector<8x1xf32>
      tpu.vector_store %arg5[%c0_20, %c0_21], %20 {strides = array<i32>} : memref<8x1xf32, #tpu.memory_space<vmem>>, vector<8x1xf32>,
    } else {
    }
    %c0_6 = arith.constant 0 : index
    %c0_7 = arith.constant 0 : index
    %7 = vector.load %arg4[%c0_6, %c0_7] : memref<8x1xf32, #tpu.memory_space<vmem>>, vector<8x1xf32>
    %cst_8 = arith.constant dense<0.000000e+00> : vector<8xf32>
    %8 = vector.multi_reduction <add>, %2, %cst_8 [1] : vector<8x128xf32> to vector<8xf32>
    %9 = vector.shape_cast %8 : vector<8xf32> to vector<8x1xf32>
    %10 = arith.addf %7, %9 : vector<8x1xf32>
    %c0_9 = arith.constant 0 : index
    %c0_10 = arith.constant 0 : index
    %11 = vector.load %arg4[%c0_9, %c0_10] : memref<8x1xf32, #tpu.memory_space<vmem>>, vector<8x1xf32>
    tpu.vector_store %arg4[%c0_9, %c0_10], %10 {strides = array<i32>} : memref<8x1xf32, #tpu.memory_space<vmem>>, vector<8x1xf32>,
    %c0_11 = arith.constant 0 : index
    %c0_12 = arith.constant 0 : index
    %12 = vector.load %arg5[%c0_11, %c0_12] : memref<8x1xf32, #tpu.memory_space<vmem>>, vector<8x1xf32>
    %13 = arith.mulf %2, %2 : vector<8x128xf32>
    %cst_13 = arith.constant dense<0.000000e+00> : vector<8xf32>
    %14 = vector.multi_reduction <add>, %13, %cst_13 [1] : vector<8x128xf32> to vector<8xf32>
    %15 = vector.shape_cast %14 : vector<8xf32> to vector<8x1xf32>
    %16 = arith.addf %12, %15 : vector<8x1xf32>
    %c0_14 = arith.constant 0 : index
    %c0_15 = arith.constant 0 : index
    %17 = vector.load %arg5[%c0_14, %c0_15] : memref<8x1xf32, #tpu.memory_space<vmem>>, vector<8x1xf32>
    tpu.vector_store %arg5[%c0_14, %c0_15], %16 {strides = array<i32>} : memref<8x1xf32, #tpu.memory_space<vmem>>, vector<8x1xf32>,
    return
  }
  func.func @transform_0(%arg0: i32) -> (i32, i32) {
    %c0_i32 = arith.constant 0 : i32
    %c0_i32_0 = arith.constant 0 : i32
    %c0_i32_1 = arith.constant 0 : i32
    return %c0_i32, %c0_i32_0 : i32, i32
  }
  func.func @transform_1(%arg0: i32) -> (i32, i32) {
    %c0_i32 = arith.constant 0 : i32
    %c0_i32_0 = arith.constant 0 : i32
    return %c0_i32, %arg0 : i32, i32
  }
  func.func @transform_2(%arg0: i32) -> (i32, i32) {
    %c0_i32 = arith.constant 0 : i32
    %c0_i32_0 = arith.constant 0 : i32
    return %c0_i32, %arg0 : i32, i32
  }
  func.func @transform_3(%arg0: i32) -> (i32, i32) {
    %c0_i32 = arith.constant 0 : i32
    %c0_i32_0 = arith.constant 0 : i32
    %c0_i32_1 = arith.constant 0 : i32
    return %c0_i32, %c0_i32_0 : i32, i32
  }
  func.func @transform_4(%arg0: i32) -> (i32, i32) {
    %c0_i32 = arith.constant 0 : i32
    %c0_i32_0 = arith.constant 0 : i32
    %c0_i32_1 = arith.constant 0 : i32
    return %c0_i32, %c0_i32_0 : i32, i32
  }
}

module attributes {stable_mosaic.version = 11 : i64} {
  func.func @_bn_proj_res_relu_kernel(%arg0: i32, %arg1: memref<8x128xf32, #tpu.memory_space<vmem>>, %arg2: memref<8x1xf32, #tpu.memory_space<vmem>>, %arg3: memref<8x1xf32, #tpu.memory_space<vmem>>, %arg4: memref<8x4xbf16, #tpu.memory_space<vmem>>, %arg5: memref<4x128xbf16, #tpu.memory_space<vmem>>, %arg6: memref<8x128xf32, #tpu.memory_space<vmem>>) attributes {dimension_semantics = [#tpu.dimension_semantics<parallel>], iteration_bounds = array<i64: 1>, scalar_prefetch = 0 : i64, scratch_operands = 0 : i64, tpu.core_type = #tpu.core_type<tc>, window_params = [{transform_indices = @transform_0, window_bounds = array<i64: 8, 128>}, {pipeline_mode = #tpu.pipeline_mode<synchronous>, transform_indices = @transform_1, window_bounds = array<i64: 8, 1>}, {pipeline_mode = #tpu.pipeline_mode<synchronous>, transform_indices = @transform_2, window_bounds = array<i64: 8, 1>}, {pipeline_mode = #tpu.pipeline_mode<synchronous>, transform_indices = @transform_3, window_bounds = array<i64: 8, 4>}, {transform_indices = @transform_4, window_bounds = array<i64: 4, 128>}, {transform_indices = @transform_5, window_bounds = array<i64: 8, 128>}]} {
    %c0 = arith.constant 0 : index
    %c0_0 = arith.constant 0 : index
    %0 = vector.load %arg1[%c0, %c0_0] : memref<8x128xf32, #tpu.memory_space<vmem>>, vector<8x128xf32>
    %c0_1 = arith.constant 0 : index
    %c0_2 = arith.constant 0 : index
    %1 = vector.load %arg2[%c0_1, %c0_2] : memref<8x1xf32, #tpu.memory_space<vmem>>, vector<8x1xf32>
    %2 = vector.broadcast %1 : vector<8x1xf32> to vector<8x128xf32>
    %3 = arith.mulf %0, %2 : vector<8x128xf32>
    %c0_3 = arith.constant 0 : index
    %c0_4 = arith.constant 0 : index
    %4 = vector.load %arg3[%c0_3, %c0_4] : memref<8x1xf32, #tpu.memory_space<vmem>>, vector<8x1xf32>
    %5 = vector.broadcast %4 : vector<8x1xf32> to vector<8x128xf32>
    %6 = arith.addf %3, %5 : vector<8x128xf32>
    %c0_5 = arith.constant 0 : index
    %c0_6 = arith.constant 0 : index
    %7 = vector.load %arg4[%c0_5, %c0_6] : memref<8x4xbf16, #tpu.memory_space<vmem>>, vector<8x4xbf16>
    %c0_7 = arith.constant 0 : index
    %c0_8 = arith.constant 0 : index
    %8 = vector.load %arg5[%c0_7, %c0_8] : memref<4x128xbf16, #tpu.memory_space<vmem>>, vector<4x128xbf16>
    %cst = arith.constant dense<0.000000e+00> : vector<8x128xf32>
    %9 = tpu.matmul %7, %8, %cst {dimension_numbers = #tpu.dot_dimension_numbers<[1], [0], [0], [1], [0, 0, 1, 1], [], []>} : vector<8x4xbf16>, vector<4x128xbf16>, vector<8x128xf32> -> vector<8x128xf32>
    %10 = arith.addf %6, %9 : vector<8x128xf32>
    %cst_9 = arith.constant 0.000000e+00 : f32
    %11 = vector.broadcast %cst_9 : f32 to vector<8x128xf32>
    %12 = arith.maximumf %10, %11 : vector<8x128xf32>
    %c0_10 = arith.constant 0 : index
    %c0_11 = arith.constant 0 : index
    %13 = vector.load %arg6[%c0_10, %c0_11] : memref<8x128xf32, #tpu.memory_space<vmem>>, vector<8x128xf32>
    tpu.vector_store %arg6[%c0_10, %c0_11], %12 {strides = array<i32>} : memref<8x128xf32, #tpu.memory_space<vmem>>, vector<8x128xf32>,
    return
  }
  func.func @transform_0(%arg0: i32) -> (i32, i32) {
    %c0_i32 = arith.constant 0 : i32
    %c0_i32_0 = arith.constant 0 : i32
    return %c0_i32, %arg0 : i32, i32
  }
  func.func @transform_1(%arg0: i32) -> (i32, i32) {
    %c0_i32 = arith.constant 0 : i32
    %c0_i32_0 = arith.constant 0 : i32
    %c0_i32_1 = arith.constant 0 : i32
    return %c0_i32, %c0_i32_0 : i32, i32
  }
  func.func @transform_2(%arg0: i32) -> (i32, i32) {
    %c0_i32 = arith.constant 0 : i32
    %c0_i32_0 = arith.constant 0 : i32
    %c0_i32_1 = arith.constant 0 : i32
    return %c0_i32, %c0_i32_0 : i32, i32
  }
  func.func @transform_3(%arg0: i32) -> (i32, i32) {
    %c0_i32 = arith.constant 0 : i32
    %c0_i32_0 = arith.constant 0 : i32
    %c0_i32_1 = arith.constant 0 : i32
    return %c0_i32, %c0_i32_0 : i32, i32
  }
  func.func @transform_4(%arg0: i32) -> (i32, i32) {
    %c0_i32 = arith.constant 0 : i32
    %c0_i32_0 = arith.constant 0 : i32
    return %c0_i32, %arg0 : i32, i32
  }
  func.func @transform_5(%arg0: i32) -> (i32, i32) {
    %c0_i32 = arith.constant 0 : i32
    %c0_i32_0 = arith.constant 0 : i32
    return %c0_i32, %arg0 : i32, i32
  }
}

</mosaic_0001>

<llo_original>
// kernel: resnet_block_forward.5
$region0: #{resnet_block_forward.5}
  #allocation0 [shape = 'u32[]', space=smem, size = 0x4, offset = 0x4, fixed_abs, tag = 'smem constant byte address 0x4 - core index']
  #allocation1 [shape = 'u32[144,128]{1,0:T(1,128)}', space=vmem, size = 0x12000, scoped, tag = 'internal scratch']
  %s0 = inlined_call_operand.vmem [shape: f32[8,128], index: 0, kind: input, shape index: {}]
  %s1 = inlined_call_operand.vmem [shape: f32[8,1], index: 1, kind: input, shape index: {}]
  %s2 = inlined_call_operand.vmem [shape: f32[8,1], index: 2, kind: input, shape index: {}]
  %s3 = inlined_call_operand.vmem [shape: f32[8,128], index: 3, kind: output, shape index: {}]
  %s4 = sld [smem:[#allocation0]]
  $region22: #{resnet_block_forward.5} parent=0
    _
  %s6 = ssub.s32 1, %s4
  %s7 = scalar_select 0, %s6, %s4
  // Predicated region
  $region2: #{resnet_block_forward.5} parent=0 // pred_check
    _
  $region3: #{resnet_block_forward.5} parent=0 // pred_check_branch
    %9 = sbr.rel (0) target = $region5
  $region4: #{resnet_block_forward.5} parent=0 // pred_region
    _
  $region5: #{resnet_block_forward.5} parent=0 // pred_fallthru
    _
  // Predicated region
  $region6: #{resnet_block_forward.5} parent=0 // pred_check
    _
  $region7: #{resnet_block_forward.5} parent=0 // pred_check_branch
    %11 = sbr.rel (0) target = $region9
  $region8: #{resnet_block_forward.5} parent=0 // pred_region
    _
  $region9: #{resnet_block_forward.5} parent=0 // pred_fallthru
    _
  // Predicated region
  $region10: #{resnet_block_forward.5} parent=0 // pred_check
    _
  $region11: #{resnet_block_forward.5} parent=0 // pred_check_branch
    %13 = sbr.rel (0) target = $region13
  $region12: #{resnet_block_forward.5} parent=0 // pred_region
    _
  $region13: #{resnet_block_forward.5} parent=0 // pred_fallthru
    _
  %v14 = vld [vmem:[%s0] sm:$0xff]
  %v15 = vld [vmem:[%s1] sm:$0xff]
  %17 = vset.pattern.permute.xlu0 0
  %18 = vperm.xlu0 %17, %v15
  %v19 = vpop.permute.xlu0 %18
  %v21 = vmul.f32 %v14, %v19
  %v22 = vld [vmem:[%s2] sm:$0xff]
  %24 = vset.pattern.permute.xlu0 0
  %25 = vperm.xlu0 %24, %v22
  %v26 = vpop.permute.xlu0 %25
  %v28 = vadd.f32 %v21, %v26
  %v29 = vmax.f32 %v28, 0.0
  %30 = vst [vmem:[%s3] sm:$0xff] %v29
  // Predicated region
  $region14: #{resnet_block_forward.5} parent=0 // pred_check
    _
  $region15: #{resnet_block_forward.5} parent=0 // pred_check_branch
    %32 = sbr.rel (0) target = $region17
  $region16: #{resnet_block_forward.5} parent=0 // pred_region
    _
  $region17: #{resnet_block_forward.5} parent=0 // pred_fallthru
    _
  // Predicated region
  $region18: #{resnet_block_forward.5} parent=0 // pred_check
    _
  $region19: #{resnet_block_forward.5} parent=0 // pred_check_branch
    %34 = sbr.rel (0) target = $region21
  $region20: #{resnet_block_forward.5} parent=0 // pred_region
    _
  $region21: #{resnet_block_forward.5} parent=0 // pred_fallthru
    _

// kernel: resnet_block_forward.4
$region0: #{resnet_block_forward.4}
  #allocation0 [shape = 'u32[]', space=smem, size = 0x4, offset = 0x4, fixed_abs, tag = 'smem constant byte address 0x4 - core index']
  #allocation1 [shape = 'u32[144,128]{1,0:T(1,128)}', space=vmem, size = 0x12000, scoped, tag = 'internal scratch']
  %s0 = inlined_call_operand.vmem [shape: bf16[8,36], index: 0, kind: input, shape index: {}]
  %s1 = inlined_call_operand.vmem [shape: bf16[36,128], index: 1, kind: input, shape index: {}]
  %s2 = inlined_call_operand.vmem [shape: f32[8,128], index: 2, kind: output, shape index: {0}]
  %s3 = inlined_call_operand.vmem [shape: f32[8,1], index: 3, kind: output, shape index: {1}]
  %s4 = inlined_call_operand.vmem [shape: f32[8,1], index: 4, kind: output, shape index: {2}]
  %5 = xla_tuple %s2, %s3, %s4
  %s6 = sld [smem:[#allocation0]]
  $region38: #{resnet_block_forward.4} parent=0
    _
  %s8 = ssub.s32 1, %s6
  %s9 = scalar_select 0, %s8, %s6
  // Predicated region
  $region2: #{resnet_block_forward.4} parent=0 // pred_check
    _
  $region3: #{resnet_block_forward.4} parent=0 // pred_check_branch
    %11 = sbr.rel (0) target = $region5
  $region4: #{resnet_block_forward.4} parent=0 // pred_region
    _
  $region5: #{resnet_block_forward.4} parent=0 // pred_fallthru
    _
  // Predicated region
  $region6: #{resnet_block_forward.4} parent=0 // pred_check
    _
  $region7: #{resnet_block_forward.4} parent=0 // pred_check_branch
    %13 = sbr.rel (0) target = $region9
  $region8: #{resnet_block_forward.4} parent=0 // pred_region
    _
  $region9: #{resnet_block_forward.4} parent=0 // pred_fallthru
    _
  %v15 = vld [vmem:[%s0] sm:$0xf]
  %v16 = vld [vmem:[%s1] sm:$0xf]
  %v17 = vld [vmem:[%s1 + $0x4] sm:$0xf]
  %v18 = vld [vmem:[%s1 + $0x8] sm:$0xf]
  %v19 = vld [vmem:[%s1 + $0xc] sm:$0xf]
  %v20 = vld [vmem:[%s1 + $0x10] sm:$0x3]
  %v26 = vunpack.c.l.b16 %v16
  %v27 = vunpack.c.l.b16 %v17
  %v28 = vunpack.c.l.b16 %v18
  %v29 = vunpack.c.l.b16 %v19
  %v30 = vunpack.c.l.b16 %v20
  %v31 = vpack.c.b16 %v27, %v26
  %v32 = vpack.c.b16 %v29, %v28
  %v33 = vpack.c.b16 %v30, %v30
  %vm36 = vcmask 293888
  %v38 = vsel %vm36, %v15, 0
  %vm40 = vcmask 1041408
  %v42 = vsel %vm40, %v33, 0
  %44 = vmatprep.subr.bf16.mxu0 0
  %45 = vmatpush1.bf16.msra.mxu0 0
  %46 = vmatprep.subr.bf16.mxu0 0
  %47 = vmatpush1.bf16.msra.mxu0 0
  %48 = vmatprep.subr.bf16.mxu0 0
  %49 = vmatpush1.bf16.msra.mxu0 0
  %50 = vmatprep.subr.bf16.mxu0 0
  %51 = vmatpush1.bf16.msra.mxu0 0
  %52 = vmatprep.subr.bf16.mxu0 0
  %53 = vmatpush1.bf16.msra.mxu0 0
  %54 = vmatprep.subr.bf16.mxu0 0
  %55 = vmatpush1.bf16.msra.mxu0 %v42
  %56 = vmatprep.subr.bf16.mxu0 0
  %57 = vmatpush1.bf16.msra.mxu0 %v32
  %58 = vmatprep.subr.bf16.mxu0 0
  %59 = vmatpush1.bf16.msra.mxu0 %v31
  %60 = vmatprep.subr.bf16.mxu0 0
  %61 = vmatpush2.bf16.msra.mxu0 0
  %62 = vmatprep.subr.bf16.mxu0 0
  %63 = vmatpush2.bf16.msra.mxu0 0
  %64 = vmatprep.subr.bf16.mxu0 0
  %65 = vmatpush2.bf16.msra.mxu0 0
  %66 = vmatprep.subr.bf16.mxu0 0
  %67 = vmatpush2.bf16.msra.mxu0 0
  %68 = vmatprep.subr.bf16.mxu0 0
  %69 = vmatpush2.bf16.msra.mxu0 0
  %70 = vmatprep.subr.bf16.mxu0 0
  %71 = vmatpush2.bf16.msra.mxu0 0
  %72 = vmatprep.subr.bf16.mxu0 0
  %73 = vmatpush2.bf16.msra.mxu0 0
  %74 = vmatprep.subr.bf16.mxu0 0
  %75 = vmatpush2.bf16.msra.mxu0 0
  %76 = vmatprep.mubr.bf16.mxu0 0
  %77 = vmatmul.mubr.bf16.gmra.mxu0 %v38
  %v78 = vpop.f32.mrf.mxu0
  %v79 = vadd.f32 0.0, %v78
  %v80 = vpop.f32.mrf.mxu0
  %v81 = vpop.f32.mrf.mxu0
  %v82 = vpop.f32.mrf.mxu0
  %83 = vdwg.mxu0
  %84 = vst [vmem:[%s2] sm:$0xff] %v79
  %p85 = scmp.eq.s32.totalorder 0, 0
  // Predicated region
  $region10: #{resnet_block_forward.4} parent=0 // pred_check
    %p86 = pneg %p85
  $region11: #{resnet_block_forward.4} parent=0 // pred_check_branch
    %88 = sbr.rel (%p86) target = $region13
  $region12: #{resnet_block_forward.4} parent=0 // pred_region
    %vm89 = vcmask 7168
    %90 = vst.msk [vmem:[%s3] sm:$0xff] %vm89, 0.0
    %91 = vst.msk [vmem:[%s4] sm:$0xff] %vm89, 0.0
  $region13: #{resnet_block_forward.4} parent=0 // pred_fallthru
    _
  %v92 = vld [vmem:[%s3] sm:$0xff]
  %93 = vadd.xlane.f32.xlu0 %v79
  %v94 = vpop.xlane.xlu0 %93
  %v95 = vadd.f32 %v92, %v94
  %vm96 = vcmask 7168
  %97 = vst.msk [vmem:[%s3] sm:$0xff] %vm96, %v95
  %v98 = vld [vmem:[%s4] sm:$0xff]
  %v99 = vmul.f32 %v79, %v79
  %100 = vadd.xlane.f32.xlu0 %v99
  %v101 = vpop.xlane.xlu0 %100
  %v102 = vadd.f32 %v98, %v101
  %103 = vst.msk [vmem:[%s4] sm:$0xff] %vm96, %v102
  // Predicated region
  $region14: #{resnet_block_forward.4} parent=0 // pred_check
    _
  $region15: #{resnet_block_forward.4} parent=0 // pred_check_branch
    %105 = sbr.rel (0) target = $region17
  $region16: #{resnet_block_forward.4} parent=0 // pred_region
    _
  $region17: #{resnet_block_forward.4} parent=0 // pred_fallthru
    _
  // Predicated region
  $region18: #{resnet_block_forward.4} parent=0 // pred_check
    _
  $region19: #{resnet_block_forward.4} parent=0 // pred_check_branch
    %107 = sbr.rel (0) target = $region21
  $region20: #{resnet_block_forward.4} parent=0 // pred_region
    _
  $region21: #{resnet_block_forward.4} parent=0 // pred_fallthru
    _
  // Predicated region
  $region22: #{resnet_block_forward.4} parent=0 // pred_check
    _
  $region23: #{resnet_block_forward.4} parent=0 // pred_check_branch
    %109 = sbr.rel (0) target = $region25
  $region24: #{resnet_block_forward.4} parent=0 // pred_region
    _
  $region25: #{resnet_block_forward.4} parent=0 // pred_fallthru
    _
  // Predicated region
  $region26: #{resnet_block_forward.4} parent=0 // pred_check
    _
  $region27: #{resnet_block_forward.4} parent=0 // pred_check_branch
    %111 = sbr.rel (0) target = $region29
  $region28: #{resnet_block_forward.4} parent=0 // pred_region
    _
  $region29: #{resnet_block_forward.4} parent=0 // pred_fallthru
    _
  // Predicated region
  $region30: #{resnet_block_forward.4} parent=0 // pred_check
    _
  $region31: #{resnet_block_forward.4} parent=0 // pred_check_branch
    %113 = sbr.rel (0) target = $region33
  $region32: #{resnet_block_forward.4} parent=0 // pred_region
    _
  $region33: #{resnet_block_forward.4} parent=0 // pred_fallthru
    _
  // Predicated region
  $region34: #{resnet_block_forward.4} parent=0 // pred_check
    _
  $region35: #{resnet_block_forward.4} parent=0 // pred_check_branch
    %115 = sbr.rel (0) target = $region37
  $region36: #{resnet_block_forward.4} parent=0 // pred_region
    _
  $region37: #{resnet_block_forward.4} parent=0 // pred_fallthru
    _

// kernel: resnet_block_forward.6
$region0: #{resnet_block_forward.6}
  #allocation0 [shape = 'u32[]', space=smem, size = 0x4, offset = 0x4, fixed_abs, tag = 'smem constant byte address 0x4 - core index']
  #allocation1 [shape = 'u32[144,128]{1,0:T(1,128)}', space=vmem, size = 0x12000, scoped, tag = 'internal scratch']
  %s0 = inlined_call_operand.vmem [shape: bf16[8,72], index: 0, kind: input, shape index: {}]
  %s1 = inlined_call_operand.vmem [shape: bf16[72,128], index: 1, kind: input, shape index: {}]
  %s2 = inlined_call_operand.vmem [shape: f32[8,128], index: 2, kind: output, shape index: {0}]
  %s3 = inlined_call_operand.vmem [shape: f32[8,1], index: 3, kind: output, shape index: {1}]
  %s4 = inlined_call_operand.vmem [shape: f32[8,1], index: 4, kind: output, shape index: {2}]
  %5 = xla_tuple %s2, %s3, %s4
  %s6 = sld [smem:[#allocation0]]
  $region38: #{resnet_block_forward.6} parent=0
    _
  %s8 = ssub.s32 1, %s6
  %s9 = scalar_select 0, %s8, %s6
  // Predicated region
  $region2: #{resnet_block_forward.6} parent=0 // pred_check
    _
  $region3: #{resnet_block_forward.6} parent=0 // pred_check_branch
    %11 = sbr.rel (0) target = $region5
  $region4: #{resnet_block_forward.6} parent=0 // pred_region
    _
  $region5: #{resnet_block_forward.6} parent=0 // pred_fallthru
    _
  // Predicated region
  $region6: #{resnet_block_forward.6} parent=0 // pred_check
    _
  $region7: #{resnet_block_forward.6} parent=0 // pred_check_branch
    %13 = sbr.rel (0) target = $region9
  $region8: #{resnet_block_forward.6} parent=0 // pred_region
    _
  $region9: #{resnet_block_forward.6} parent=0 // pred_fallthru
    _
  %v15 = vld [vmem:[%s0] sm:$0xf]
  %v16 = vld [vmem:[%s1] sm:$0xf]
  %v17 = vld [vmem:[%s1 + $0x4] sm:$0xf]
  %v18 = vld [vmem:[%s1 + $0x8] sm:$0xf]
  %v19 = vld [vmem:[%s1 + $0xc] sm:$0xf]
  %v20 = vld [vmem:[%s1 + $0x10] sm:$0xf]
  %v21 = vld [vmem:[%s1 + $0x14] sm:$0xf]
  %v22 = vld [vmem:[%s1 + $0x18] sm:$0xf]
  %v23 = vld [vmem:[%s1 + $0x1c] sm:$0xf]
  %v24 = vld [vmem:[%s1 + $0x20] sm:$0xf]
  %v34 = vunpack.c.l.b16 %v16
  %v35 = vunpack.c.l.b16 %v17
  %v36 = vunpack.c.l.b16 %v18
  %v37 = vunpack.c.l.b16 %v19
  %v38 = vunpack.c.l.b16 %v20
  %v39 = vunpack.c.l.b16 %v21
  %v40 = vunpack.c.l.b16 %v22
  %v41 = vunpack.c.l.b16 %v23
  %v42 = vunpack.c.l.b16 %v24
  %v43 = vpack.c.b16 %v35, %v34
  %v44 = vpack.c.b16 %v37, %v36
  %v45 = vpack.c.b16 %v39, %v38
  %v46 = vpack.c.b16 %v41, %v40
  %v47 = vpack.c.b16 %v42, %v42
  %vm52 = vcmask 588800
  %v54 = vsel %vm52, %v15, 0
  %vm56 = vcmask 1043456
  %v58 = vsel %vm56, %v47, 0
  %60 = vmatprep.subr.bf16.mxu0 0
  %61 = vmatpush1.bf16.msra.mxu0 0
  %62 = vmatprep.subr.bf16.mxu0 0
  %63 = vmatpush1.bf16.msra.mxu0 0
  %64 = vmatprep.subr.bf16.mxu0 0
  %65 = vmatpush1.bf16.msra.mxu0 0
  %66 = vmatprep.subr.bf16.mxu0 0
  %67 = vmatpush1.bf16.msra.mxu0 %v58
  %68 = vmatprep.subr.bf16.mxu0 0
  %69 = vmatpush1.bf16.msra.mxu0 %v46
  %70 = vmatprep.subr.bf16.mxu0 0
  %71 = vmatpush1.bf16.msra.mxu0 %v45
  %72 = vmatprep.subr.bf16.mxu0 0
  %73 = vmatpush1.bf16.msra.mxu0 %v44
  %74 = vmatprep.subr.bf16.mxu0 0
  %75 = vmatpush1.bf16.msra.mxu0 %v43
  %76 = vmatprep.subr.bf16.mxu0 0
  %77 = vmatpush2.bf16.msra.mxu0 0
  %78 = vmatprep.subr.bf16.mxu0 0
  %79 = vmatpush2.bf16.msra.mxu0 0
  %80 = vmatprep.subr.bf16.mxu0 0
  %81 = vmatpush2.bf16.msra.mxu0 0
  %82 = vmatprep.subr.bf16.mxu0 0
  %83 = vmatpush2.bf16.msra.mxu0 0
  %84 = vmatprep.subr.bf16.mxu0 0
  %85 = vmatpush2.bf16.msra.mxu0 0
  %86 = vmatprep.subr.bf16.mxu0 0
  %87 = vmatpush2.bf16.msra.mxu0 0
  %88 = vmatprep.subr.bf16.mxu0 0
  %89 = vmatpush2.bf16.msra.mxu0 0
  %90 = vmatprep.subr.bf16.mxu0 0
  %91 = vmatpush2.bf16.msra.mxu0 0
  %92 = vmatprep.mubr.bf16.mxu0 0
  %93 = vmatmul.mubr.bf16.gmra.mxu0 %v54
  %v94 = vpop.f32.mrf.mxu0
  %v95 = vadd.f32 0.0, %v94
  %v96 = vpop.f32.mrf.mxu0
  %v97 = vpop.f32.mrf.mxu0
  %v98 = vpop.f32.mrf.mxu0
  %99 = vdwg.mxu0
  %100 = vst [vmem:[%s2] sm:$0xff] %v95
  %p101 = scmp.eq.s32.totalorder 0, 0
  // Predicated region
  $region10: #{resnet_block_forward.6} parent=0 // pred_check
    %p102 = pneg %p101
  $region11: #{resnet_block_forward.6} parent=0 // pred_check_branch
    %104 = sbr.rel (%p102) target = $region13
  $region12: #{resnet_block_forward.6} parent=0 // pred_region
    %vm105 = vcmask 7168
    %106 = vst.msk [vmem:[%s3] sm:$0xff] %vm105, 0.0
    %107 = vst.msk [vmem:[%s4] sm:$0xff] %vm105, 0.0
  $region13: #{resnet_block_forward.6} parent=0 // pred_fallthru
    _
  %v108 = vld [vmem:[%s3] sm:$0xff]
  %109 = vadd.xlane.f32.xlu0 %v95
  %v110 = vpop.xlane.xlu0 %109
  %v111 = vadd.f32 %v108, %v110
  %vm112 = vcmask 7168
  %113 = vst.msk [vmem:[%s3] sm:$0xff] %vm112, %v111
  %v114 = vld [vmem:[%s4] sm:$0xff]
  %v115 = vmul.f32 %v95, %v95
  %116 = vadd.xlane.f32.xlu0 %v115
  %v117 = vpop.xlane.xlu0 %116
  %v118 = vadd.f32 %v114, %v117
  %119 = vst.msk [vmem:[%s4] sm:$0xff] %vm112, %v118
  // Predicated region
  $region14: #{resnet_block_forward.6} parent=0 // pred_check
    _
  $region15: #{resnet_block_forward.6} parent=0 // pred_check_branch
    %121 = sbr.rel (0) target = $region17
  $region16: #{resnet_block_forward.6} parent=0 // pred_region
    _
  $region17: #{resnet_block_forward.6} parent=0 // pred_fallthru
    _
  // Predicated region
  $region18: #{resnet_block_forward.6} parent=0 // pred_check
    _
  $region19: #{resnet_block_forward.6} parent=0 // pred_check_branch
    %123 = sbr.rel (0) target = $region21
  $region20: #{resnet_block_forward.6} parent=0 // pred_region
    _
  $region21: #{resnet_block_forward.6} parent=0 // pred_fallthru
    _
  // Predicated region
  $region22: #{resnet_block_forward.6} parent=0 // pred_check
    _
  $region23: #{resnet_block_forward.6} parent=0 // pred_check_branch
    %125 = sbr.rel (0) target = $region25
  $region24: #{resnet_block_forward.6} parent=0 // pred_region
    _
  $region25: #{resnet_block_forward.6} parent=0 // pred_fallthru
    _
  // Predicated region
  $region26: #{resnet_block_forward.6} parent=0 // pred_check
    _
  $region27: #{resnet_block_forward.6} parent=0 // pred_check_branch
    %127 = sbr.rel (0) target = $region29
  $region28: #{resnet_block_forward.6} parent=0 // pred_region
    _
  $region29: #{resnet_block_forward.6} parent=0 // pred_fallthru
    _
  // Predicated region
  $region30: #{resnet_block_forward.6} parent=0 // pred_check
    _
  $region31: #{resnet_block_forward.6} parent=0 // pred_check_branch
    %129 = sbr.rel (0) target = $region33
  $region32: #{resnet_block_forward.6} parent=0 // pred_region
    _
  $region33: #{resnet_block_forward.6} parent=0 // pred_fallthru
    _
  // Predicated region
  $region34: #{resnet_block_forward.6} parent=0 // pred_check
    _
  $region35: #{resnet_block_forward.6} parent=0 // pred_check_branch
    %131 = sbr.rel (0) target = $region37
  $region36: #{resnet_block_forward.6} parent=0 // pred_region
    _
  $region37: #{resnet_block_forward.6} parent=0 // pred_fallthru
    _

// kernel: resnet_block_forward.7
$region0: #{resnet_block_forward.7}
  #allocation0 [shape = 'u32[]', space=smem, size = 0x4, offset = 0x4, fixed_abs, tag = 'smem constant byte address 0x4 - core index']
  #allocation1 [shape = 'u32[144,128]{1,0:T(1,128)}', space=vmem, size = 0x12000, scoped, tag = 'internal scratch']
  %s0 = inlined_call_operand.vmem [shape: f32[8,128], index: 0, kind: input, shape index: {}]
  %s1 = inlined_call_operand.vmem [shape: f32[8,1], index: 1, kind: input, shape index: {}]
  %s2 = inlined_call_operand.vmem [shape: f32[8,1], index: 2, kind: input, shape index: {}]
  %s3 = inlined_call_operand.vmem [shape: bf16[8,4], index: 3, kind: input, shape index: {}]
  %s4 = inlined_call_operand.vmem [shape: bf16[4,128], index: 4, kind: input, shape index: {}]
  %s5 = inlined_call_operand.vmem [shape: f32[8,128], index: 5, kind: output, shape index: {}]
  %s6 = sld [smem:[#allocation0]]
  $region30: #{resnet_block_forward.7} parent=0
    _
  %s8 = ssub.s32 1, %s6
  %s9 = scalar_select 0, %s8, %s6
  // Predicated region
  $region2: #{resnet_block_forward.7} parent=0 // pred_check
    _
  $region3: #{resnet_block_forward.7} parent=0 // pred_check_branch
    %11 = sbr.rel (0) target = $region5
  $region4: #{resnet_block_forward.7} parent=0 // pred_region
    _
  $region5: #{resnet_block_forward.7} parent=0 // pred_fallthru
    _
  // Predicated region
  $region6: #{resnet_block_forward.7} parent=0 // pred_check
    _
  $region7: #{resnet_block_forward.7} parent=0 // pred_check_branch
    %13 = sbr.rel (0) target = $region9
  $region8: #{resnet_block_forward.7} parent=0 // pred_region
    _
  $region9: #{resnet_block_forward.7} parent=0 // pred_fallthru
    _
  // Predicated region
  $region10: #{resnet_block_forward.7} parent=0 // pred_check
    _
  $region11: #{resnet_block_forward.7} parent=0 // pred_check_branch
    %15 = sbr.rel (0) target = $region13
  $region12: #{resnet_block_forward.7} parent=0 // pred_region
    _
  $region13: #{resnet_block_forward.7} parent=0 // pred_fallthru
    _
  // Predicated region
  $region14: #{resnet_block_forward.7} parent=0 // pred_check
    _
  $region15: #{resnet_block_forward.7} parent=0 // pred_check_branch
    %17 = sbr.rel (0) target = $region17
  $region16: #{resnet_block_forward.7} parent=0 // pred_region
    _
  $region17: #{resnet_block_forward.7} parent=0 // pred_fallthru
    _
  // Predicated region
  $region18: #{resnet_block_forward.7} parent=0 // pred_check
    _
  $region19: #{resnet_block_forward.7} parent=0 // pred_check_branch
    %19 = sbr.rel (0) target = $region21
  $region20: #{resnet_block_forward.7} parent=0 // pred_region
    _
  $region21: #{resnet_block_forward.7} parent=0 // pred_fallthru
    _
  %v21 = vld [vmem:[%s0] sm:$0xff]
  %v22 = vld [vmem:[%s1] sm:$0xff]
  %24 = vset.pattern.permute.xlu0 0
  %25 = vperm.xlu0 %24, %v22
  %v26 = vpop.permute.xlu0 %25
  %v28 = vmul.f32 %v21, %v26
  %v29 = vld [vmem:[%s2] sm:$0xff]
  %31 = vset.pattern.permute.xlu0 0
  %32 = vperm.xlu0 %31, %v29
  %v33 = vpop.permute.xlu0 %32
  %v35 = vadd.f32 %v28, %v33
  %v36 = vld [vmem:[%s3] sm:$0xf]
  %v37 = vld [vmem:[%s4] sm:$0x3]
  %vm38 = vcmask 31744
  %v40 = vsel %vm38, %v36, 0
  %vm42 = vcmask 1041408
  %v44 = vsel %vm42, %v37, 0
  %46 = vmatprep.subr.bf16.mxu0 0
  %47 = vmatpush1.bf16.msra.mxu0 0
  %48 = vmatprep.subr.bf16.mxu0 0
  %49 = vmatpush1.bf16.msra.mxu0 0
  %50 = vmatprep.subr.bf16.mxu0 0
  %51 = vmatpush1.bf16.msra.mxu0 0
  %52 = vmatprep.subr.bf16.mxu0 0
  %53 = vmatpush1.bf16.msra.mxu0 0
  %54 = vmatprep.subr.bf16.mxu0 0
  %55 = vmatpush1.bf16.msra.mxu0 0
  %56 = vmatprep.subr.bf16.mxu0 0
  %57 = vmatpush1.bf16.msra.mxu0 0
  %58 = vmatprep.subr.bf16.mxu0 0
  %59 = vmatpush1.bf16.msra.mxu0 0
  %60 = vmatprep.subr.bf16.mxu0 0
  %61 = vmatpush1.bf16.msra.mxu0 %v44
  %62 = vmatprep.subr.bf16.mxu0 0
  %63 = vmatpush2.bf16.msra.mxu0 0
  %64 = vmatprep.subr.bf16.mxu0 0
  %65 = vmatpush2.bf16.msra.mxu0 0
  %66 = vmatprep.subr.bf16.mxu0 0
  %67 = vmatpush2.bf16.msra.mxu0 0
  %68 = vmatprep.subr.bf16.mxu0 0
  %69 = vmatpush2.bf16.msra.mxu0 0
  %70 = vmatprep.subr.bf16.mxu0 0
  %71 = vmatpush2.bf16.msra.mxu0 0
  %72 = vmatprep.subr.bf16.mxu0 0
  %73 = vmatpush2.bf16.msra.mxu0 0
  %74 = vmatprep.subr.bf16.mxu0 0
  %75 = vmatpush2.bf16.msra.mxu0 0
  %76 = vmatprep.subr.bf16.mxu0 0
  %77 = vmatpush2.bf16.msra.mxu0 0
  %78 = vmatprep.mubr.bf16.mxu0 0
  %79 = vmatmul.mubr.bf16.gmra.mxu0 %v40
  %v80 = vpop.f32.mrf.mxu0
  %v81 = vadd.f32 0.0, %v80
  %v82 = vpop.f32.mrf.mxu0
  %v83 = vpop.f32.mrf.mxu0
  %v84 = vpop.f32.mrf.mxu0
  %85 = vdwg.mxu0
  %v86 = vadd.f32 %v35, %v81
  %v87 = vmax.f32 %v86, 0.0
  %88 = vst [vmem:[%s5] sm:$0xff] %v87
  // Predicated region
  $region22: #{resnet_block_forward.7} parent=0 // pred_check
    _
  $region23: #{resnet_block_forward.7} parent=0 // pred_check_branch
    %90 = sbr.rel (0) target = $region25
  $region24: #{resnet_block_forward.7} parent=0 // pred_region
    _
  $region25: #{resnet_block_forward.7} parent=0 // pred_fallthru
    _
  // Predicated region
  $region26: #{resnet_block_forward.7} parent=0 // pred_check
    _
  $region27: #{resnet_block_forward.7} parent=0 // pred_check_branch
    %92 = sbr.rel (0) target = $region29
  $region28: #{resnet_block_forward.7} parent=0 // pred_region
    _
  $region29: #{resnet_block_forward.7} parent=0 // pred_fallthru
    _

</llo_original>
